<compile_context>
chip_gen: v5e
topology: v5e:2x2
jax: 0.10.0
libtpu: 0.0.40
codegen_flags: <defaults>
</compile_context>

<pallas_src>
import functools

import jax
import jax.numpy as jnp
import numpy as np
from jax import lax
from jax.experimental import pallas as pl
from jax.experimental.pallas import tpu as pltpu

EPS = 1e-5      # nn.BatchNorm2d default eps
LANES = 128     # TPU lane width


def _round_up(x, m):
    return (x + m - 1) // m * m


@functools.lru_cache(maxsize=1)
def _roll_matches_jnp():
    """Defensive: pin pltpu.roll's rotation convention once at runtime.

    pltpu.roll is expected to match jnp.roll (out[p] = in[(p - shift) % n]); a
    flipped convention would silently mirror the conv taps, so we check with a
    tiny one-off kernel.  Called outside jit (eager wrapper), cached.
    """
    def k(x_ref, o_ref):
        o_ref[...] = pltpu.roll(x_ref[...], shift=1, axis=0)

    x = jnp.arange(8 * LANES, dtype=jnp.float32).reshape(8, LANES)
    y = pl.pallas_call(k, out_shape=jax.ShapeDtypeStruct((8, LANES), jnp.float32))(x)
    return bool(np.asarray(y)[1, 0] == np.asarray(x)[0, 0])


# ---------------------------------------------------------------------------
# in-kernel helpers
# ---------------------------------------------------------------------------
def _conv3x3(x_slab, w_ref, TB, H, W, roll_jnp):
    """3x3 'SAME' conv on a flattened (TB*H*W, Ci) activation slab.

    Spatial shifts are whole-row pltpu.roll's on an f32 slab (channels stay in
    lanes); image borders (and cross-image wrap inside a batch tile) are
    handled with iota masks shared across taps.  MXU operands bf16, f32 acc.
    """
    R, Ci = x_slab.shape
    x32 = x_slab.astype(jnp.float32)

    ii = lax.broadcasted_iota(jnp.int32, (TB, H, W, Ci), 1).reshape(R, Ci)
    jj = lax.broadcasted_iota(jnp.int32, (TB, H, W, Ci), 2).reshape(R, Ci)
    # Row / col validity masks shared across the 9 taps (None == all-valid).
    row_ok = {-1: ii >= 1, 0: None, 1: ii < (H - 1)}
    col_ok = {-1: jj >= 1, 0: None, 1: jj < (W - 1)}

    acc = None
    for dh in (-1, 0, 1):
        for dw in (-1, 0, 1):
            delta = dh * W + dw                      # flat row shift for this tap
            if delta == 0:
                shifted = x32
            else:
                shift = (-delta) % R if roll_jnp else delta % R
                shifted = pltpu.roll(x32, shift=shift, axis=0)
            m = row_ok[dh]
            if col_ok[dw] is not None:
                m = col_ok[dw] if m is None else (m & col_ok[dw])
            if m is None:
                tap_in = shifted.astype(jnp.bfloat16)
            else:
                tap_in = jnp.where(m, shifted, 0.0).astype(jnp.bfloat16)
            tap = (dh + 1) * 3 + (dw + 1)
            d = jnp.dot(tap_in, w_ref[tap], preferred_element_type=jnp.float32)
            acc = d if acc is None else acc + d
    return acc                                        # (R, Co) f32


def _write_stats(st_ref, vals):
    """Write partial BN stats (sum, sum-of-squares) rows into an (8, C) block."""
    st_ref[...] = jnp.zeros_like(st_ref)
    row = 0
    for v in vals:
        vf = v.astype(jnp.float32)
        st_ref[row:row + 1, :] = jnp.sum(vf, axis=0, keepdims=True)
        st_ref[row + 1:row + 2, :] = jnp.sum(vf * vf, axis=0, keepdims=True)
        row += 2


def _stage1_kernel(x_ref, w1_ref, *rest, TB, H, W, has_proj, roll_jnp):
    if has_proj:
        ws_ref, y1_ref, sc_ref, st_ref = rest
    else:
        y1_ref, st_ref = rest

    R = TB * H * W
    Ci = x_ref.shape[-1]
    Co = y1_ref.shape[-1]

    x = x_ref[...].reshape(R, Ci)                        # bf16, lane-dense
    y1 = _conv3x3(x, w1_ref, TB, H, W, roll_jnp).astype(jnp.bfloat16)
    y1_ref[...] = y1.reshape(TB, H, W, Co)

    if has_proj:
        sc = jnp.dot(x, ws_ref[...],
                     preferred_element_type=jnp.float32).astype(jnp.bfloat16)
        sc_ref[...] = sc.reshape(TB, H, W, Co)
        _write_stats(st_ref, [y1, sc])                   # rows 0..3
    else:
        _write_stats(st_ref, [y1])                       # rows 0..1


def _stage2_kernel(y1_ref, a1_ref, b1_ref, w2_ref, y2_ref, st_ref,
                   *, TB, H, W, roll_jnp):
    R = TB * H * W
    Co = y1_ref.shape[-1]
    y1 = y1_ref[...].reshape(R, Co).astype(jnp.float32)
    h1 = jnp.maximum(y1 * a1_ref[...] + b1_ref[...], 0.0)       # BN1 + ReLU (f32)
    y2 = _conv3x3(h1, w2_ref, TB, H, W, roll_jnp).astype(jnp.bfloat16)
    y2_ref[...] = y2.reshape(TB, H, W, Co)
    _write_stats(st_ref, [y2])


def _stage3_kernel(y2_ref, a2_ref, b2_ref, s_ref, *rest, TB, H, W, has_proj):
    if has_proj:
        as_ref, bs_ref, out_ref = rest
    else:
        (out_ref,) = rest
    R = TB * H * W
    Co = y2_ref.shape[-1]
    h2 = y2_ref[...].reshape(R, Co).astype(jnp.float32) * a2_ref[...] + b2_ref[...]
    s = s_ref[...].reshape(R, Co).astype(jnp.float32)
    if has_proj:
        s = s * as_ref[...] + bs_ref[...]                        # shortcut BN
    out_ref[...] = jnp.maximum(h2 + s, 0.0).reshape(TB, H, W, Co)


# ---------------------------------------------------------------------------
# wrapper
# ---------------------------------------------------------------------------
def _bn_affine(s, q, gamma, beta, count, eps):
    mean = s / count
    var = jnp.maximum(q / count - mean * mean, 0.0)
    scale = gamma * lax.rsqrt(var + eps)
    shift = beta - mean * scale
    return scale.reshape(1, -1), shift.reshape(1, -1)


def _choose_tb(n, per_image_bytes, budget_bytes=24 * 1024 * 1024):
    divisors = [d for d in range(1, n + 1) if n % d == 0]
    fits = [d for d in divisors if d * per_image_bytes <= budget_bytes] or [1]
    multi = [d for d in fits if n // d >= 2]     # keep >=2 grid steps (pipelining/megacore)
    return max(multi) if multi else max(fits)


def basic_block(x_nchw, params, eps=EPS):
    """Forward pass of uresnet BasicBlock (training-mode BatchNorm). NCHW in/out."""
    N, Cin, H, W = x_nchw.shape
    Cout = params["conv1_w"].shape[0]
    has_proj = (Cin != Cout)

    if W % 8 != 0:
        # TODO(synk): general W needs W-padding plus extra stats masks (bf16
        # activations prefer W % 16 for free in-kernel reshapes); uresnet
        # shapes have W % 8 == 0.
        raise NotImplementedError("W must be a multiple of 8")

    roll_jnp = _roll_matches_jnp()

    Cinp = _round_up(Cin, LANES)
    Coutp = _round_up(Cout, LANES)

    # ---- layout prep (lane-dense channels, bf16 activations & weights) -------
    # NOTE: the NCHW->NHWC transpose + channel pad stays an XLA op (one small
    # HBM round trip); spatial zero-padding is handled in-kernel with masks.
    x = jnp.transpose(x_nchw, (0, 2, 3, 1)).astype(jnp.float32)
    x = jnp.pad(x, ((0, 0), (0, 0), (0, 0), (0, Cinp - Cin))).astype(jnp.bfloat16)

    def prep_w3x3(w, cip, cop):
        ci, co = w.shape[1], w.shape[0]
        k = jnp.transpose(w, (2, 3, 1, 0)).reshape(9, ci, co)
        k = jnp.pad(k, ((0, 0), (0, cip - ci), (0, cop - co)))
        return k.astype(jnp.bfloat16)

    def prep_vec(v, cp):
        return jnp.pad(v.astype(jnp.float32), (0, cp - v.shape[0]))

    w1 = prep_w3x3(params["conv1_w"], Cinp, Coutp)
    w2 = prep_w3x3(params["conv2_w"], Coutp, Coutp)
    g1, be1 = prep_vec(params["bn1_g"], Coutp), prep_vec(params["bn1_b"], Coutp)
    g2, be2 = prep_vec(params["bn2_g"], Coutp), prep_vec(params["bn2_b"], Coutp)
    if has_proj:
        ws = jnp.pad(params["sc_conv_w"].reshape(Cout, Cin).T,
                     ((0, Cinp - Cin), (0, Coutp - Cout))).astype(jnp.bfloat16)
        gs, bes = prep_vec(params["sc_bn_g"], Coutp), prep_vec(params["sc_bn_b"], Coutp)
    # Conv biases are ignored on purpose: bias -> training-mode BN is a no-op.

    # ---- tiling ---------------------------------------------------------------
    # rough VMEM working set per image (bf16 acts double-buffered + f32 temps)
    per_image = 4 * H * W * (6 * Cinp + 10 * Coutp)
    TB = _choose_tb(N, per_image)
    T = N // TB

    cparams = pltpu.CompilerParams(
        dimension_semantics=("parallel",),
        vmem_limit_bytes=48 * 1024 * 1024,
    )

    def tile4(c):
        return pl.BlockSpec((TB, H, W, c), lambda t: (t, 0, 0, 0))

    def whole(shape):
        return pl.BlockSpec(tuple(shape), lambda t: (0,) * len(shape))

    st_spec = pl.BlockSpec((8, Coutp), lambda t: (t, 0))
    act_bf16 = jax.ShapeDtypeStruct((N, H, W, Coutp), jnp.bfloat16)
    out_f32 = jax.ShapeDtypeStruct((N, H, W, Coutp), jnp.float32)
    st_shape = jax.ShapeDtypeStruct((T * 8, Coutp), jnp.float32)

    # ---- stage 1: conv1 (+ 1x1 shortcut conv) + partial BN stats --------------
    s1_in = [x, w1] + ([ws] if has_proj else [])
    s1_in_specs = [tile4(Cinp), whole((9, Cinp, Coutp))] + \
                  ([whole((Cinp, Coutp))] if has_proj else [])
    s1_out_shape = [act_bf16] + ([act_bf16] if has_proj else []) + [st_shape]
    s1_out_specs = [tile4(Coutp)] + ([tile4(Coutp)] if has_proj else []) + [st_spec]

    s1 = pl.pallas_call(
        functools.partial(_stage1_kernel, TB=TB, H=H, W=W,
                          has_proj=has_proj, roll_jnp=roll_jnp),
        grid=(T,),
        in_specs=s1_in_specs,
        out_specs=s1_out_specs,
        out_shape=s1_out_shape,
        compiler_params=cparams,
    )(*s1_in)
    if has_proj:
        y1, sc, st1 = s1
    else:
        y1, st1 = s1
        sc = x                                   # identity shortcut (Cinp == Coutp)

    cnt = float(N * H * W)
    st1 = st1.reshape(T, 8, Coutp).sum(axis=0)
    a1, b1 = _bn_affine(st1[0], st1[1], g1, be1, cnt, eps)
    if has_proj:
        a_s, b_s = _bn_affine(st1[2], st1[3], gs, bes, cnt, eps)

    # ---- stage 2: bn1 + relu + conv2 + partial BN2 stats ----------------------
    y2, st2 = pl.pallas_call(
        functools.partial(_stage2_kernel, TB=TB, H=H, W=W, roll_jnp=roll_jnp),
        grid=(T,),
        in_specs=[tile4(Coutp), whole((1, Coutp)), whole((1, Coutp)),
                  whole((9, Coutp, Coutp))],
        out_specs=[tile4(Coutp), st_spec],
        out_shape=[act_bf16, st_shape],
        compiler_params=cparams,
    )(y1, a1, b1, w2)

    st2 = st2.reshape(T, 8, Coutp).sum(axis=0)
    a2, b2 = _bn_affine(st2[0], st2[1], g2, be2, cnt, eps)

    # ---- stage 3: bn2 + shortcut-bn + add + relu ------------------------------
    s3_in = [y2, a2, b2, sc] + ([a_s, b_s] if has_proj else [])
    s3_in_specs = [tile4(Coutp), whole((1, Coutp)), whole((1, Coutp)),
                   tile4(Coutp)] + \
                  ([whole((1, Coutp)), whole((1, Coutp))] if has_proj else [])
    out = pl.pallas_call(
        functools.partial(_stage3_kernel, TB=TB, H=H, W=W, has_proj=has_proj),
        grid=(T,),
        in_specs=s3_in_specs,
        out_specs=tile4(Coutp),
        out_shape=out_f32,
        compiler_params=cparams,
    )(*s3_in)

    return jnp.transpose(out[..., :Cout], (0, 3, 1, 2))      # NHWC -> NCHW


# ---------------------------------------------------------------------------
# pure-JAX reference (faithful to the PyTorch module, training-mode BN)
# ---------------------------------------------------------------------------
def ref_basic_block(x, p, eps=EPS):
    def conv(x, w, b, pad):
        y = lax.conv_general_dilated(
            x, w, window_strides=(1, 1), padding=((pad, pad), (pad, pad)),
            dimension_numbers=("NCHW", "OIHW", "NCHW"))
        return y + b.reshape(1, -1, 1, 1)

    def bn(y, g, b):
        mu = jnp.mean(y, axis=(0, 2, 3), keepdims=True)
        var = jnp.mean((y - mu) ** 2, axis=(0, 2, 3), keepdims=True)
        return ((y - mu) * lax.rsqrt(var + eps) * g.reshape(1, -1, 1, 1)
                + b.reshape(1, -1, 1, 1))

    h1 = jax.nn.relu(bn(conv(x, p["conv1_w"], p["conv1_b"], 1),
                        p["bn1_g"], p["bn1_b"]))
    h2 = bn(conv(h1, p["conv2_w"], p["conv2_b"], 1), p["bn2_g"], p["bn2_b"])
    if "sc_conv_w" in p:
        s = bn(conv(x, p["sc_conv_w"], p["sc_conv_b"], 0),
               p["sc_bn_g"], p["sc_bn_b"])
    else:
        s = x
    return jax.nn.relu(h2 + s)


if __name__ == "__main__":
    def make_params(key, cin, cout):
        ks = jax.random.split(key, 12)
        p = {
            "conv1_w": 0.1 * jax.random.normal(ks[0], (cout, cin, 3, 3), jnp.float32),
            "conv1_b": 0.1 * jax.random.normal(ks[1], (cout,), jnp.float32),
            "bn1_g": 1.0 + 0.1 * jax.random.normal(ks[2], (cout,), jnp.float32),
            "bn1_b": 0.1 * jax.random.normal(ks[3], (cout,), jnp.float32),
            "conv2_w": 0.1 * jax.random.normal(ks[4], (cout, cout, 3, 3), jnp.float32),
            "conv2_b": 0.1 * jax.random.normal(ks[5], (cout,), jnp.float32),
            "bn2_g": 1.0 + 0.1 * jax.random.normal(ks[6], (cout,), jnp.float32),
            "bn2_b": 0.1 * jax.random.normal(ks[7], (cout,), jnp.float32),
        }
        if cin != cout:
            p.update({
                "sc_conv_w": 0.1 * jax.random.normal(ks[8], (cout, cin, 1, 1), jnp.float32),
                "sc_conv_b": 0.1 * jax.random.normal(ks[9], (cout,), jnp.float32),
                "sc_bn_g": 1.0 + 0.1 * jax.random.normal(ks[10], (cout,), jnp.float32),
                "sc_bn_b": 0.1 * jax.random.normal(ks[11], (cout,), jnp.float32),
            })
        return p

    key = jax.random.PRNGKey(0)
    kx, kp1, kp2 = jax.random.split(key, 3)

    N, Cin, Cout, H, W = 2, 4, 8, 16, 16
    x = jax.random.normal(kx, (N, Cin, H, W), jnp.float32)

    # bf16 MXU operands + bf16 inter-stage activation storage (f32 accumulation
    # and f32 BN stats) -> slightly looser tolerance vs the f32 reference.
    TOL = 2.5e-2

    # projection-shortcut case (in_channels != out_channels)
    p = make_params(kp1, Cin, Cout)
    out = jax.block_until_ready(basic_block(x, p))
    ref = jax.block_until_ready(ref_basic_block(x, p))
    np.testing.assert_allclose(np.asarray(out), np.asarray(ref), rtol=TOL, atol=TOL)

    # identity-shortcut case (in_channels == out_channels)
    p_id = make_params(kp2, Cin, Cin)
    out_id = jax.block_until_ready(basic_block(x, p_id))
    ref_id = jax.block_until_ready(ref_basic_block(x, p_id))
    np.testing.assert_allclose(np.asarray(out_id), np.asarray(ref_id), rtol=TOL, atol=TOL)

    print("KERNEL_OK")
</pallas_src>

<mosaic_0001>
module attributes {stable_mosaic.version = 11 : i64} {
  func.func @k(%arg0: memref<8x128xf32, #tpu.memory_space<vmem>>, %arg1: memref<8x128xf32, #tpu.memory_space<vmem>>) attributes {dimension_semantics = [], scalar_prefetch = 0 : i64, scratch_operands = 0 : i64, tpu.core_type = #tpu.core_type<tc>} {
    %c0 = arith.constant 0 : index
    %c0_0 = arith.constant 0 : index
    %0 = vector.load %arg0[%c0, %c0_0] : memref<8x128xf32, #tpu.memory_space<vmem>>, vector<8x128xf32>
    %c1_i32 = arith.constant 1 : i32
    %1 = tpu.dynamic_rotate %0 by %c1_i32 dim 0 : vector<8x128xf32>, i32 -> vector<8x128xf32>
    %c0_1 = arith.constant 0 : index
    %c0_2 = arith.constant 0 : index
    %2 = vector.load %arg1[%c0_1, %c0_2] : memref<8x128xf32, #tpu.memory_space<vmem>>, vector<8x128xf32>
    tpu.vector_store %arg1[%c0_1, %c0_2], %1 {strides = array<i32>} : memref<8x128xf32, #tpu.memory_space<vmem>>, vector<8x128xf32>,
    return
  }
}

</mosaic_0001>

<llo_original>
// kernel: tpu_custom_call.1
$region0: #{tpu_custom_call.1}
  #allocation0 [shape = 'u32[]', space=smem, size = 0x4, offset = 0x4, fixed_abs, tag = 'smem constant byte address 0x4 - core index']
  #allocation1 [shape = 'u32[72,128]{1,0:T(1,128)}', space=vmem, size = 0x9000, scoped, tag = 'internal scratch']
  %s0 = inlined_call_operand.hbm [shape: f32[8,128], index: 0, kind: input, shape index: {}]
  %s1 = inlined_call_operand.hbm [shape: f32[8,128], index: 1, kind: output, shape index: {}]
  %s2 = sld [smem:[#allocation0]]
  $region18: #{tpu_custom_call.1} parent=0
    _
  %s4 = ssub.s32 1, %s2
  %s5 = scalar_select 0, %s4, %s2
  $region1: #{tpu_custom_call.1} parent=0
    #allocation2 [shape = 'u8[4096]{0}', space=vmem, size = 0x1000, scoped, tag = 'input window, operand 0, single buffered']
    #allocation3 [shape = 's32[1]{0}', space=sflag, size = 0x4, scoped, tag = 'scoped memory for tpu_custom_call.1']
    #allocation4 [shape = 's32[1]{0}', space=sflag, size = 0x4, scoped, tag = 'scoped memory for tpu_custom_call.1']
    #allocation5 [shape = 'u8[4096]{0}', space=vmem, size = 0x1000, scoped, tag = 'output window, operand 0, single buffered']
    %6 = vsyncpa [#allocation3], 0
    %7 = vsyncpa [#allocation4], 0
    // Predicated region
    $region2: #{tpu_custom_call.1} parent=1 // pred_check
      _
    $region3: #{tpu_custom_call.1} parent=1 // pred_check_branch
      %9 = sbr.rel (0) target = $region5
    $region4: #{tpu_custom_call.1} parent=1 // pred_region
      %11 = vsyncadd [#allocation3], 0
      %s13 = sshll.u32 %s0, 4
      %s14 = int_to_ptr.hbm [resolvable:$true] %s13
      %s15 = sshll.u32 [#allocation2], 4
      %s16 = int_to_ptr.vmem [resolvable:$true] %s15
      %18 = dma.hbm_to_vmem [thread:$0]  %s14, 128, %s16, [#allocation3]
    $region5: #{tpu_custom_call.1} parent=1 // pred_fallthru
      _
    // Predicated region
    $region6: #{tpu_custom_call.1} parent=1 // pred_check
      _
    $region7: #{tpu_custom_call.1} parent=1 // pred_check_branch
      %20 = sbr.rel (0) target = $region9
    $region8: #{tpu_custom_call.1} parent=1 // pred_region
      %22 = dma.done [#allocation3], 128
    $region9: #{tpu_custom_call.1} parent=1 // pred_fallthru
      _
    %v23 = vld [vmem:[#allocation2] sm:$0xff]
    %v24 = vrot.slane %v23, 7
    %25 = vst [vmem:[#allocation5] sm:$0xff] %v24
    // Predicated region
    $region10: #{tpu_custom_call.1} parent=1 // pred_check
      _
    $region11: #{tpu_custom_call.1} parent=1 // pred_check_branch
      %27 = sbr.rel (0) target = $region13
    $region12: #{tpu_custom_call.1} parent=1 // pred_region
      %29 = vsyncadd [#allocation4], 0
      %s31 = sshll.u32 [#allocation5], 4
      %s32 = int_to_ptr.vmem [resolvable:$true] %s31
      %s33 = sshll.u32 %s1, 4
      %s34 = int_to_ptr.hbm [resolvable:$true] %s33
      %36 = dma.vmem_to_hbm [thread:$0]  %s32, 128, %s34, [#allocation4]
    $region13: #{tpu_custom_call.1} parent=1 // pred_fallthru
      _
    // Predicated region
    $region14: #{tpu_custom_call.1} parent=1 // pred_check
      _
    $region15: #{tpu_custom_call.1} parent=1 // pred_check_branch
      %38 = sbr.rel (0) target = $region17
    $region16: #{tpu_custom_call.1} parent=1 // pred_region
      %40 = dma.done [#allocation4], 128
    $region17: #{tpu_custom_call.1} parent=1 // pred_fallthru
      _
    %41 = vsyncpa [#allocation3], 1
    %42 = vsyncpa [#allocation4], 1

</llo_original>
